<compile_context>
chip_gen: v7x
topology: tpu7x:2x2x1
jax: 0.10.0
libtpu: 0.0.40
codegen_flags: <defaults>
</compile_context>

<pallas_src>
import jax
import jax.numpy as jnp
from jax.experimental import pallas as pl
from jax.experimental.pallas import tpu as pltpu


def _round_up(x, m):
    return ((x + m - 1) // m) * m


def _tp_linear_kernel(x_ref, w_ref, b_ref, o_ref, acc_ref):
    # grid = (shard, i over M, j over N_local, k over K)
    k = pl.program_id(3)

    @pl.when(k == 0)
    def _():
        acc_ref[...] = jnp.zeros_like(acc_ref)

    # x_ref: (tm, tk), w_ref: (tk, tn) -> pure MXU accumulate, f32 accumulator.
    acc_ref[...] += jnp.dot(
        x_ref[...], w_ref[...], preferred_element_type=jnp.float32
    )

    @pl.when(k == pl.num_programs(3) - 1)
    def _():
        # Bias added exactly once (last K step), then cast to the output dtype.
        o_ref[...] = (acc_ref[...] + b_ref[...]).astype(o_ref.dtype)


def tp_column_linear(x, weight_shards, bias_shards, *, tm=256, tn=256, tk=512):
    """Simulated tensor-parallel column-split linear.

    Every 'rank' sees the same x (the scatter sends identical copies); local
    outputs land contiguously in the full output (the gather + cat).
    """
    B, In = x.shape
    world_size = len(weight_shards)
    local_out = weight_shards[0].shape[0]
    out_features = world_size * local_out
    dtype = x.dtype

    # Pad: M/K to sublane multiples, N_local (lane axis of the output) to 128
    # so the stores are unmasked / lane-dense.
    M_pad = _round_up(B, 8)
    K_pad = _round_up(In, 8)
    N_pad = _round_up(local_out, 128)

    # Clamp tiles to the (padded) problem, then make the padded dims divisible.
    tm = min(tm, M_pad)
    tk = min(tk, K_pad)
    tn = min(tn, N_pad)
    M_pad = _round_up(M_pad, tm)
    K_pad = _round_up(K_pad, tk)
    N_pad = _round_up(N_pad, tn)

    # Input padded once, shared by all shards.
    x_p = jnp.zeros((M_pad, K_pad), dtype).at[:B, :In].set(x)

    # Pre-transposed, stacked weights: (world_size, K_pad, N_pad); biases
    # stacked as (world_size, 1, N_pad). Zero padding contributes nothing.
    w_p = jnp.zeros((world_size, K_pad, N_pad), dtype)
    b_p = jnp.zeros((world_size, 1, N_pad), jnp.float32)
    for r, (w, b) in enumerate(zip(weight_shards, bias_shards)):
        w_p = w_p.at[r, :In, :local_out].set(w.T.astype(dtype))
        b_p = b_p.at[r, 0, :local_out].set(b.astype(jnp.float32))

    n_blocks = N_pad // tn
    grid = (world_size, M_pad // tm, n_blocks, K_pad // tk)

    out_p = pl.pallas_call(
        _tp_linear_kernel,
        out_shape=jax.ShapeDtypeStruct((M_pad, world_size * N_pad), dtype),
        grid_spec=pltpu.PrefetchScalarGridSpec(
            num_scalar_prefetch=0,
            grid=grid,
            in_specs=[
                # x tile shared across shards / N blocks.
                pl.BlockSpec((tm, tk), lambda s, i, j, k: (i, k)),
                # weight shard tile, already (K, N): no in-kernel transpose.
                pl.BlockSpec((None, tk, tn), lambda s, i, j, k: (s, k, j)),
                # bias tile, resident across K (index does not depend on k).
                pl.BlockSpec((None, 1, tn), lambda s, i, j, k: (s, 0, j)),
            ],
            # Each shard writes its own lane-dense column block of the full
            # output slab -> the "gather + cat" is just where we store.
            out_specs=pl.BlockSpec(
                (tm, tn), lambda s, i, j, k: (i, s * n_blocks + j)
            ),
            scratch_shapes=[pltpu.VMEM((tm, tn), jnp.float32)],
        ),
        compiler_params=pltpu.CompilerParams(
            dimension_semantics=("parallel", "parallel", "parallel", "arbitrary"),
        ),
    )(x_p, w_p, b_p)

    # Strip padding. If local_out is already a multiple of 128 this is a plain
    # (cheap) slice; otherwise one reshape/slice removes the per-shard pad.
    if N_pad == local_out:
        out = out_p[:B, :out_features]
    else:
        out = (
            out_p[:B]
            .reshape(B, world_size, N_pad)[:, :, :local_out]
            .reshape(B, out_features)
        )
    return out


if __name__ == "__main__":
    # Small, deterministic config matching the module's forward.
    batch_size = 8
    in_features = 32
    out_features = 64
    world_size = 2
    local_out = out_features // world_size

    key = jax.random.PRNGKey(0)
    k_x, k_w, k_b = jax.random.split(key, 3)

    x = jax.random.normal(k_x, (batch_size, in_features), dtype=jnp.float32)

    # nn.Linear-style init: U(-1/sqrt(in), 1/sqrt(in)) per shard (deterministic).
    bound = 1.0 / (in_features ** 0.5)
    w_keys = jax.random.split(k_w, world_size)
    b_keys = jax.random.split(k_b, world_size)
    weight_shards = [
        jax.random.uniform(
            w_keys[r], (local_out, in_features), jnp.float32,
            minval=-bound, maxval=bound,
        )
        for r in range(world_size)
    ]
    bias_shards = [
        jax.random.uniform(
            b_keys[r], (local_out,), jnp.float32, minval=-bound, maxval=bound
        )
        for r in range(world_size)
    ]

    out = tp_column_linear(x, weight_shards, bias_shards)
    out = jax.block_until_ready(out)

    # Reference check in plain JAX (same math as the gathered rank-0 output).
    w_full = jnp.concatenate(weight_shards, axis=0)   # (out_features, in_features)
    b_full = jnp.concatenate(bias_shards, axis=0)     # (out_features,)
    ref = x @ w_full.T + b_full
    assert out.shape == (batch_size, out_features)
    assert jnp.allclose(out, ref, atol=1e-5, rtol=1e-5)

    print("KERNEL_OK")
</pallas_src>

<mosaic_0001>
module attributes {stable_mosaic.version = 11 : i64} {
  func.func @_tp_linear_kernel(%arg0: i32, %arg1: i32, %arg2: i32, %arg3: i32, %arg4: memref<8x32xf32, #tpu.memory_space<vmem>>, %arg5: memref<1x32x128xf32, #tpu.memory_space<vmem>>, %arg6: memref<1x1x128xf32, #tpu.memory_space<vmem>>, %arg7: memref<8x128xf32, #tpu.memory_space<vmem>>, %arg8: memref<8x128xf32, #tpu.memory_space<vmem>>) attributes {dimension_semantics = [#tpu.dimension_semantics<parallel>, #tpu.dimension_semantics<parallel>, #tpu.dimension_semantics<parallel>, #tpu.dimension_semantics<arbitrary>], iteration_bounds = array<i64: 2, 1, 1, 1>, scalar_prefetch = 0 : i64, scratch_operands = 1 : i64, tpu.core_type = #tpu.core_type<tc>, window_params = [{transform_indices = @transform_0, window_bounds = array<i64: 8, 32>}, {transform_indices = @transform_1, window_bounds = array<i64: 1, 32, 128>}, {transform_indices = @transform_2, window_bounds = array<i64: 1, 1, 128>}, {transform_indices = @transform_3, window_bounds = array<i64: 8, 128>}]} {
    %c0_i32 = arith.constant 0 : i32
    %0 = arith.cmpi eq, %arg3, %c0_i32 : i32
    %1 = arith.extui %0 : i1 to i32
    %c0_i32_0 = arith.constant 0 : i32
    %2 = arith.cmpi ne, %1, %c0_i32_0 : i32
    scf.if %2 {
      %cst_11 = arith.constant 0.000000e+00 : f32
      %13 = vector.broadcast %cst_11 : f32 to vector<8x128xf32>
      %c0_12 = arith.constant 0 : index
      %c0_13 = arith.constant 0 : index
      %14 = vector.load %arg8[%c0_12, %c0_13] : memref<8x128xf32, #tpu.memory_space<vmem>>, vector<8x128xf32>
      tpu.vector_store %arg8[%c0_12, %c0_13], %13 {strides = array<i32>} : memref<8x128xf32, #tpu.memory_space<vmem>>, vector<8x128xf32>,
    } else {
    }
    %c0 = arith.constant 0 : index
    %c0_1 = arith.constant 0 : index
    %3 = vector.load %arg8[%c0, %c0_1] : memref<8x128xf32, #tpu.memory_space<vmem>>, vector<8x128xf32>
    %c0_2 = arith.constant 0 : index
    %c0_3 = arith.constant 0 : index
    %4 = vector.load %arg4[%c0_2, %c0_3] : memref<8x32xf32, #tpu.memory_space<vmem>>, vector<8x32xf32>
    %c0_4 = arith.constant 0 : index
    %c0_5 = arith.constant 0 : index
    %c0_6 = arith.constant 0 : index
    %5 = vector.load %arg5[%c0_4, %c0_5, %c0_6] : memref<1x32x128xf32, #tpu.memory_space<vmem>>, vector<1x32x128xf32>
    %6 = vector.shape_cast %5 : vector<1x32x128xf32> to vector<32x128xf32>
    %cst = arith.constant dense<0.000000e+00> : vector<8x128xf32>
    %7 = tpu.matmul %4, %6, %cst {dimension_numbers = #tpu.dot_dimension_numbers<[1], [0], [0], [1], [0, 0, 1, 1], [], []>} : vector<8x32xf32>, vector<32x128xf32>, vector<8x128xf32> -> vector<8x128xf32>
    %8 = arith.addf %3, %7 : vector<8x128xf32>
    %c0_7 = arith.constant 0 : index
    %c0_8 = arith.constant 0 : index
    %9 = vector.load %arg8[%c0_7, %c0_8] : memref<8x128xf32, #tpu.memory_space<vmem>>, vector<8x128xf32>
    tpu.vector_store %arg8[%c0_7, %c0_8], %8 {strides = array<i32>} : memref<8x128xf32, #tpu.memory_space<vmem>>, vector<8x128xf32>,
    %c0_i32_9 = arith.constant 0 : i32
    %10 = arith.cmpi eq, %arg3, %c0_i32_9 : i32
    %11 = arith.extui %10 : i1 to i32
    %c0_i32_10 = arith.constant 0 : i32
    %12 = arith.cmpi ne, %11, %c0_i32_10 : i32
    scf.if %12 {
      %c0_11 = arith.constant 0 : index
      %c0_12 = arith.constant 0 : index
      %13 = vector.load %arg8[%c0_11, %c0_12] : memref<8x128xf32, #tpu.memory_space<vmem>>, vector<8x128xf32>
      %c0_13 = arith.constant 0 : index
      %c0_14 = arith.constant 0 : index
      %c0_15 = arith.constant 0 : index
      %14 = vector.load %arg6[%c0_13, %c0_14, %c0_15] : memref<1x1x128xf32, #tpu.memory_space<vmem>>, vector<1x1x128xf32>
      %15 = vector.shape_cast %14 : vector<1x1x128xf32> to vector<1x128xf32>
      %16 = vector.broadcast %15 : vector<1x128xf32> to vector<8x128xf32>
      %17 = arith.addf %13, %16 : vector<8x128xf32>
      %c0_16 = arith.constant 0 : index
      %c0_17 = arith.constant 0 : index
      %18 = vector.load %arg7[%c0_16, %c0_17] : memref<8x128xf32, #tpu.memory_space<vmem>>, vector<8x128xf32>
      tpu.vector_store %arg7[%c0_16, %c0_17], %17 {strides = array<i32>} : memref<8x128xf32, #tpu.memory_space<vmem>>, vector<8x128xf32>,
    } else {
    }
    return
  }
  func.func @transform_0(%arg0: i32, %arg1: i32, %arg2: i32, %arg3: i32) -> (i32, i32) {
    %c0_i32 = arith.constant 0 : i32
    return %arg1, %arg3 : i32, i32
  }
  func.func @transform_1(%arg0: i32, %arg1: i32, %arg2: i32, %arg3: i32) -> (i32, i32, i32) {
    %c0_i32 = arith.constant 0 : i32
    return %arg0, %arg3, %arg2 : i32, i32, i32
  }
  func.func @transform_2(%arg0: i32, %arg1: i32, %arg2: i32, %arg3: i32) -> (i32, i32, i32) {
    %c0_i32 = arith.constant 0 : i32
    %c0_i32_0 = arith.constant 0 : i32
    return %arg0, %c0_i32, %arg2 : i32, i32, i32
  }
  func.func @transform_3(%arg0: i32, %arg1: i32, %arg2: i32, %arg3: i32) -> (i32, i32) {
    %c1_i32 = arith.constant 1 : i32
    %0 = arith.muli %arg0, %c1_i32 : i32
    %1 = arith.addi %0, %arg2 : i32
    %c0_i32 = arith.constant 0 : i32
    return %arg1, %1 : i32, i32
  }
}

</mosaic_0001>

<llo_original>
// kernel: tpu_custom_call.1
$region0: #{tpu_custom_call.1}
  #allocation0 [shape = 'u32[]', space=smem, size = 0x4, offset = 0x4, fixed_abs, tag = 'smem constant byte address 0x4 - core index']
  #allocation1 [shape = 'u32[144,128]{1,0:T(1,128)}', space=vmem, size = 0x12000, scoped, tag = 'internal scratch']
  #allocation2 [shape = 'f32[8,128]{1,0:T(8,128)}', space=vmem, size = 0x1000, scoped, tag = 'scratch operand']
  %s0 = inlined_call_operand.hbm [shape: f32[8,32], index: 0, kind: input, shape index: {}]
  %s1 = inlined_call_operand.hbm [shape: f32[2,32,128], index: 1, kind: input, shape index: {}]
  %s2 = inlined_call_operand.vmem [shape: f32[2,1,128], index: 2, kind: input, shape index: {}]
  %s3 = inlined_call_operand.hbm [shape: f32[8,256], index: 3, kind: output, shape index: {}]
  %s4 = sld [smem:[#allocation0]]
  $region61: #{tpu_custom_call.1} parent=0
    _
  %s6 = ssub.s32 1, %s4
  %s7 = scalar_select 0, %s6, %s4
  $region1: #{tpu_custom_call.1} parent=0
    #allocation3 [shape = 'u8[4096]{0}', space=vmem, size = 0x1000, scoped, tag = 'input window, operand 0, single buffered']
    #allocation4 [shape = 's32[2]{0}', space=sflag, size = 0x8, scoped, tag = 'scoped memory for tpu_custom_call.1']
    #allocation5 [shape = 's32[2]{0}', space=sflag, size = 0x8, scoped, tag = 'scoped memory for tpu_custom_call.1']
    #allocation6 [shape = 'u8[32768]{0}', space=vmem, size = 0x8000, scoped, tag = 'input window, operand 1']
    #allocation7 [shape = 's32[2]{0}', space=sflag, size = 0x8, scoped, tag = 'scoped memory for tpu_custom_call.1']
    #allocation8 [shape = 'u8[8192]{0}', space=vmem, size = 0x2000, scoped, tag = 'output window, operand 0']
    %8 = vsyncpa [#allocation4], 0
    %9 = vsyncpa [#allocation7], 0
    %s10 = scalar_lea.sflag [#allocation7], 1
    %11 = vsyncpa %s10, 0
    %12 = vsyncpa [#allocation5], 0
    %s13 = scalar_lea.sflag [#allocation5], 1
    %14 = vsyncpa %s13, 0
    loop: start=0, step=1, limit=4
    $region2: #{tpu_custom_call.1} parent=1 // loop_pre_header
      _
    $region3: #{tpu_custom_call.1} parent=1 // loop_header
      %s16 = sphi 0, %s20
      %p17 = scmp.ge.s32.totalorder %s16, 4
      %s23 = sphi 0, %s49
      %s24 = sphi 0, %s45
      %s25 = sphi 0, %s41
      %s26 = sphi 0, %s37
      %s27 = sphi 0, %s23
      %s28 = sphi 0, %s24
      %s29 = sphi 0, %s25
      %s30 = sphi 0, %s26
      %s31 = sphi 0, %s27
      %s32 = sphi 0, %s28
      %s33 = sphi 0, %s29
      %s34 = sphi 0, %s30
      %s54 = sphi 0, %s56
      %s57 = sphi 0, %s54
      %s58 = sphi 0, %s57
      %s74 = sphi 0, %s58
      %s84 = sphi 0, %s86
      %s87 = sphi 0, %s84
      %s88 = sphi 0, %s87
      %s104 = sphi 0, %s88
      %s112 = sphi 0, %s114
      %s115 = sphi 0, %s112
      %s116 = sphi 0, %s115
      %s132 = sphi 0, %s116
      %s142 = sphi 0, %s144
      %s145 = sphi 0, %s142
      %s146 = sphi 0, %s145
      %s162 = sphi 0, %s146
    $region4: #{tpu_custom_call.1} parent=1 // loop_header_branch
      %19 = sbr.rel (%p17) target = $region8
    $region5: #{tpu_custom_call.1} parent=1 // loop_body
      %s21 = ssub.s32 %s16, 1
      %s22 = ssub.s32 %s16, 2
      %s35 = sadd.s32 1, %s26
      %p36 = scmp.ge.s32.totalorder %s35, 1
      %s37 = scalar_select %p36, 0, %s35
      %s38 = sadd.s32 1, %s25
      %s39 = scalar_select %p36, %s38, %s25
      %p40 = scmp.ge.s32.totalorder %s39, 1
      %s41 = scalar_select %p40, 0, %s39
      %s42 = sadd.s32 1, %s24
      %s43 = scalar_select %p40, %s42, %s24
      %p44 = scmp.ge.s32.totalorder %s43, 1
      %s45 = scalar_select %p44, 0, %s43
      %s46 = sadd.s32 1, %s23
      %s47 = scalar_select %p44, %s46, %s23
      %p48 = scmp.ge.s32.totalorder %s47, 2
      %s49 = scalar_select %p48, 0, %s47
      %s50 = ssub.s32 %s24, %s45
      %s51 = ssub.s32 %s26, %s37
      %s52 = sor.u32 %s50, %s51
      %p53 = scmp.eq.s32.totalorder %s52, 0
      %s55 = sadd.s32 %s54, 1
      %s56 = scalar_select %p53, %s54, %s55
      %p59 = pneg %p53
      %p60 = scmp.eq.s32.totalorder %s16, 1
      %p61 = por %p59, %p60
      %p62 = scmp.ne.s32.totalorder %s54, %s57
      %p63 = scmp.eq.s32.totalorder %s16, 0
      %p64 = por %p62, %p63
      %p65 = scmp.ne.s32.totalorder %s54, %s57
      %p66 = scmp.eq.s32.totalorder %s21, 1
      %p67 = por %p65, %p66
      %p68 = scmp.ne.s32.totalorder %s57, %s58
      %p69 = scmp.eq.s32.totalorder %s21, 0
      %p70 = por %p68, %p69
      %p71 = scmp.ne.s32.totalorder %s57, %s58
      %p72 = scmp.eq.s32.totalorder %s22, 1
      %p73 = por %p71, %p72
      %p75 = scmp.ne.s32.totalorder %s58, %s74
      %p76 = scmp.eq.s32.totalorder %s22, 0
      %p77 = por %p75, %p76
      %s78 = ssub.s32 %s23, %s49
      %s79 = ssub.s32 %s26, %s37
      %s80 = sor.u32 %s78, %s79
      %s81 = ssub.s32 %s25, %s41
      %s82 = sor.u32 %s80, %s81
      %p83 = scmp.eq.s32.totalorder %s82, 0
      %s85 = sadd.s32 %s84, 1
      %s86 = scalar_select %p83, %s84, %s85
      %p89 = pneg %p83
      %p90 = scmp.eq.s32.totalorder %s16, 1
      %p91 = por %p89, %p90
      %p92 = scmp.ne.s32.totalorder %s84, %s87
      %p93 = scmp.eq.s32.totalorder %s16, 0
      %p94 = por %p92, %p93
      %p95 = scmp.ne.s32.totalorder %s84, %s87
      %p96 = scmp.eq.s32.totalorder %s21, 1
      %p97 = por %p95, %p96
      %p98 = scmp.ne.s32.totalorder %s87, %s88
      %p99 = scmp.eq.s32.totalorder %s21, 0
      %p100 = por %p98, %p99
      %p101 = scmp.ne.s32.totalorder %s87, %s88
      %p102 = scmp.eq.s32.totalorder %s22, 1
      %p103 = por %p101, %p102
      %p105 = scmp.ne.s32.totalorder %s88, %s104
      %p106 = scmp.eq.s32.totalorder %s22, 0
      %p107 = por %p105, %p106
      %s108 = ssub.s32 %s23, %s49
      %s109 = ssub.s32 %s25, %s41
      %s110 = sor.u32 %s108, %s109
      %p111 = scmp.eq.s32.totalorder %s110, 0
      %s113 = sadd.s32 %s112, 1
      %s114 = scalar_select %p111, %s112, %s113
      %p117 = pneg %p111
      %p118 = scmp.eq.s32.totalorder %s16, 1
      %p119 = por %p117, %p118
      %p120 = scmp.ne.s32.totalorder %s112, %s115
      %p121 = scmp.eq.s32.totalorder %s16, 0
      %p122 = por %p120, %p121
      %p123 = scmp.ne.s32.totalorder %s112, %s115
      %p124 = scmp.eq.s32.totalorder %s21, 1
      %p125 = por %p123, %p124
      %p126 = scmp.ne.s32.totalorder %s115, %s116
      %p127 = scmp.eq.s32.totalorder %s21, 0
      %p128 = por %p126, %p127
      %p129 = scmp.ne.s32.totalorder %s115, %s116
      %p130 = scmp.eq.s32.totalorder %s22, 1
      %p131 = por %p129, %p130
      %p133 = scmp.ne.s32.totalorder %s116, %s132
      %p134 = scmp.eq.s32.totalorder %s22, 0
      %p135 = por %p133, %p134
      %s136 = sadd.s32 %s23, %s25
      %s137 = sadd.s32 %s49, %s41
      %s138 = ssub.s32 %s24, %s45
      %s139 = ssub.s32 %s136, %s137
      %s140 = sor.u32 %s138, %s139
      %p141 = scmp.eq.s32.totalorder %s140, 0
      %s143 = sadd.s32 %s142, 1
      %s144 = scalar_select %p141, %s142, %s143
      %p147 = pneg %p141
      %p148 = scmp.eq.s32.totalorder %s16, 1
      %p149 = por %p147, %p148
      %p150 = scmp.ne.s32.totalorder %s142, %s145
      %p151 = scmp.eq.s32.totalorder %s16, 0
      %p152 = por %p150, %p151
      %p153 = scmp.ne.s32.totalorder %s142, %s145
      %p154 = scmp.eq.s32.totalorder %s21, 1
      %p155 = por %p153, %p154
      %p156 = scmp.ne.s32.totalorder %s145, %s146
      %p157 = scmp.eq.s32.totalorder %s21, 0
      %p158 = por %p156, %p157
      %p159 = scmp.ne.s32.totalorder %s145, %s146
      %p160 = scmp.eq.s32.totalorder %s22, 1
      %p161 = por %p159, %p160
      %p163 = scmp.ne.s32.totalorder %s146, %s162
      %p164 = scmp.eq.s32.totalorder %s22, 0
      %p165 = por %p163, %p164
      %p166 = scmp.le.s32.totalorder 1, %s16
      %p167 = scmp.lt.s32.totalorder %s16, 3
      %p168 = pnand %p166, %p167
      %p169 = pneg %p168
      // Predicated region
      $region9: #{tpu_custom_call.1} parent=5 // pred_check
        _
      $region10: #{tpu_custom_call.1} parent=5 // pred_check_branch
        %171 = sbr.rel (%p168) target = $region12
      $region11: #{tpu_custom_call.1} parent=5 // pred_region
        %s172 = ssub.s32 %s16, 1
        // Predicated region
        $region13: #{tpu_custom_call.1} parent=11 // pred_check
          %p173 = pneg %p70
        $region14: #{tpu_custom_call.1} parent=11 // pred_check_branch
          %175 = sbr.rel (%p173) target = $region16
        $region15: #{tpu_custom_call.1} parent=11 // pred_region
          %s177 = ssub.s32 128, 128
          %178 = vsyncadd [#allocation4], %s177
          %s179 = sadd.s32 %s30, %s28
          %s180 = smul.addr %s179, 128
          %s181 = scalar_lea.hbm %s0, %s180
          %s183 = sshll.u32 [#allocation3], 4
          %s184 = int_to_ptr.vmem [resolvable:$true] %s183
          %186 = dma.hbm_to_vmem [thread:$0]  %s181, 128, %s184, [#allocation4]
        $region16: #{tpu_custom_call.1} parent=11 // pred_fallthru
          _
      $region12: #{tpu_custom_call.1} parent=5 // pred_fallthru
        _
      %p187 = scmp.lt.s32.totalorder %s16, 2
      // Predicated region
      $region17: #{tpu_custom_call.1} parent=5 // pred_check
        %p188 = pneg %p187
      $region18: #{tpu_custom_call.1} parent=5 // pred_check_branch
        %190 = sbr.rel (%p188) target = $region20
      $region19: #{tpu_custom_call.1} parent=5 // pred_region
        // Predicated region
        $region21: #{tpu_custom_call.1} parent=19 // pred_check
          %p191 = pneg %p94
        $region22: #{tpu_custom_call.1} parent=19 // pred_check_branch
          %193 = sbr.rel (%p191) target = $region24
        $region23: #{tpu_custom_call.1} parent=19 // pred_region
          %s194 = sand.u32 %s84, 1
          %s195 = scalar_lea.sflag [#allocation7], %s194
          %s196 = sand.u32 %s84, 1
          %s197 = smul.addr %s196, 32
          %s198 = scalar_lea.vmem [#allocation6], %s197
          %s199 = smul.u32 4, %s26
          %s201 = ssub.s32 512, 512
          %202 = vsyncadd %s195, %s201
          %s203 = sadd.s32 %s25, %s199
          %s204 = smul.addr %s23, 4
          %s205 = sadd.s32 %s203, %s204
          %s206 = smul.addr %s205, 128
          %s207 = scalar_lea.hbm %s1, %s206
          %s208 = sshll.u32 %s198, 4
          %s209 = int_to_ptr.vmem [resolvable:$true] %s208
          %214 = dma.hbm_to_vmem [thread:$0]  %s207, 512, %s209, %s195, 128, 128, 8
        $region24: #{tpu_custom_call.1} parent=19 // pred_fallthru
          _
        // Predicated region
        $region25: #{tpu_custom_call.1} parent=19 // pred_check
          %p215 = pneg %p122
        $region26: #{tpu_custom_call.1} parent=19 // pred_check_branch
          %217 = sbr.rel (%p215) target = $region28
        $region27: #{tpu_custom_call.1} parent=19 // pred_region
          %p218 = scmp.lt.s32.totalorder %s23, 1
          %s219 = scalar_select %p218, %s23, 1
          %p220 = scmp.lt.s32.totalorder %s25, 0
          %s221 = scalar_select %p220, %s25, 0
          %s222 = sadd.s32 %s221, %s219
          %s223 = scalar_lea.vmem %s2, %s222
        $region28: #{tpu_custom_call.1} parent=19 // pred_fallthru
          _
      $region20: #{tpu_custom_call.1} parent=5 // pred_fallthru
        _
      %p224 = scmp.le.s32.totalorder 1, %s16
      %p225 = scmp.lt.s32.totalorder %s16, 3
      %p226 = pnand %p224, %p225
      %p227 = pneg %p226
      // Predicated region
      $region29: #{tpu_custom_call.1} parent=5 // pred_check
        _
      $region30: #{tpu_custom_call.1} parent=5 // pred_check_branch
        %229 = sbr.rel (%p226) target = $region32
      $region31: #{tpu_custom_call.1} parent=5 // pred_region
        %s230 = ssub.s32 %s16, 1
        // Predicated region
        $region33: #{tpu_custom_call.1} parent=31 // pred_check
          %p231 = pneg %p70
        $region34: #{tpu_custom_call.1} parent=31 // pred_check_branch
          %233 = sbr.rel (%p231) target = $region36
        $region35: #{tpu_custom_call.1} parent=31 // pred_region
          %234 = dma.done [#allocation4], 128
        $region36: #{tpu_custom_call.1} parent=31 // pred_fallthru
          _
        %s235 = sand.u32 %s87, 1
        %s236 = scalar_lea.sflag [#allocation7], %s235
        %s237 = sand.u32 %s87, 1
        %s238 = smul.addr %s237, 32
        %s239 = scalar_lea.vmem [#allocation6], %s238
        // Predicated region
        $region37: #{tpu_custom_call.1} parent=31 // pred_check
          %p240 = pneg %p100
        $region38: #{tpu_custom_call.1} parent=31 // pred_check_branch
          %242 = sbr.rel (%p240) target = $region40
        $region39: #{tpu_custom_call.1} parent=31 // pred_region
          %243 = dma.done %s236, 512
        $region40: #{tpu_custom_call.1} parent=31 // pred_fallthru
          _
        %p244 = pneg %p70
        %p245 = pneg %p67
        %s246 = sand.u32 %s87, 1
        %s247 = scalar_lea.sflag [#allocation7], %s246
        %s248 = sand.u32 %s87, 1
        %s249 = smul.addr %s248, 32
        %s250 = scalar_lea.vmem [#allocation6], %s249
        %p251 = pneg %p100
        %p252 = pneg %p97
        %p253 = scmp.lt.s32.totalorder %s27, 1
        %s254 = scalar_select %p253, %s27, 1
        %p255 = scmp.lt.s32.totalorder %s29, 0
        %s256 = scalar_select %p255, %s29, 0
        %s257 = sadd.s32 %s256, %s254
        %s258 = scalar_lea.vmem %s2, %s257
        %p259 = pneg %p128
        %p260 = pneg %p125
        %p261 = pneg %p158
        %p262 = pneg %p155
        %s263 = sand.u32 %s145, 1
        %s264 = scalar_lea.sflag [#allocation5], %s263
        %s265 = sand.u32 %s145, 1
        %s266 = smul.addr %s265, 8
        %s267 = scalar_lea.vmem [#allocation8], %s266
        %s268 = smul.u32 4, %s30
        %p269 = scmp.lt.s32.totalorder %s27, 1
        %s270 = scalar_select %p269, %s27, 1
        %p271 = scmp.lt.s32.totalorder %s29, 0
        %s272 = scalar_select %p271, %s29, 0
        %s273 = sadd.s32 %s272, %s270
        %s274 = scalar_lea.vmem %s2, %s273
        %s275 = sadd.s32 %s27, %s29
        %p276 = scmp.eq.s32.totalorder %s30, 0
        // Predicated region
        $region41: #{tpu_custom_call.1} parent=31 // pred_check
          %p277 = pneg %p276
        $region42: #{tpu_custom_call.1} parent=31 // pred_check_branch
          %279 = sbr.rel (%p277) target = $region44
        $region43: #{tpu_custom_call.1} parent=31 // pred_region
          %280 = vst [vmem:[#allocation2] sm:$0xff] 0.0
        $region44: #{tpu_custom_call.1} parent=31 // pred_fallthru
          _
        %v281 = vld [vmem:[#allocation2] sm:$0xff]
        %v282 = vld [vmem:[#allocation3] sm:$0xff]
        %v283 = vld [vmem:[%s239] sm:$0xff]
        %v284 = vld [vmem:[%s239 + $0x8] sm:$0xff]
        %v285 = vld [vmem:[%s239 + $0x10] sm:$0xff]
        %v286 = vld [vmem:[%s239 + $0x18] sm:$0xff]
        %vm287 = vcmask 261120
        %v289 = vsel %vm287, %v282, 0
        %291 = vmatprep.subr.mxu0 0.0
        %292 = vmatpush1.msra.mxu0 %v283
        %293 = vmatprep.subr.mxu0 0.0
        %294 = vmatpush1.msra.mxu0 %v284
        %295 = vmatprep.subr.mxu0 0.0
        %296 = vmatpush1.msra.mxu0 %v285
        %297 = vmatprep.subr.mxu0 0.0
        %298 = vmatpush1.msra.mxu0 %v286
        %299 = vmatprep.subr.mxu0 0.0
        %300 = vmatpush1.msra.mxu0 0.0
        %301 = vmatprep.subr.mxu0 0.0
        %302 = vmatpush1.msra.mxu0 0.0
        %303 = vmatprep.subr.mxu0 0.0
        %304 = vmatpush1.msra.mxu0 0.0
        %305 = vmatprep.subr.mxu0 0.0
        %306 = vmatpush1.msra.mxu0 0.0
        %307 = vmatprep.subr.mxu0 0.0
        %308 = vmatpush1.msra.mxu0 0.0
        %309 = vmatprep.subr.mxu0 0.0
        %310 = vmatpush1.msra.mxu0 0.0
        %311 = vmatprep.subr.mxu0 0.0
        %312 = vmatpush1.msra.mxu0 0.0
        %313 = vmatprep.subr.mxu0 0.0
        %314 = vmatpush1.msra.mxu0 0.0
        %315 = vmatprep.subr.mxu0 0.0
        %316 = vmatpush1.msra.mxu0 0.0
        %317 = vmatprep.subr.mxu0 0.0
        %318 = vmatpush1.msra.mxu0 0.0
        %319 = vmatprep.subr.mxu0 0.0
        %320 = vmatpush1.msra.mxu0 0.0
        %321 = vmatprep.subr.mxu0 0.0
        %322 = vmatpush1.msra.mxu0 0.0
        %323 = vmatprep.subr.mxu0 0.0
        %324 = vmatpush1.msra.mxu0 0.0
        %325 = vmatprep.subr.mxu0 0.0
        %326 = vmatpush1.msra.mxu0 0.0
        %327 = vmatprep.subr.mxu0 0.0
        %328 = vmatpush1.msra.mxu0 0.0
        %329 = vmatprep.subr.mxu0 0.0
        %330 = vmatpush1.msra.mxu0 0.0
        %331 = vmatprep.subr.mxu0 0.0
        %332 = vmatpush1.msra.mxu0 0.0
        %333 = vmatprep.subr.mxu0 0.0
        %334 = vmatpush1.msra.mxu0 0.0
        %335 = vmatprep.subr.mxu0 0.0
        %336 = vmatpush1.msra.mxu0 0.0
        %337 = vmatprep.subr.mxu0 0.0
        %338 = vmatpush1.msra.mxu0 0.0
        %339 = vmatprep.subr.mxu0 0.0
        %340 = vmatpush1.msra.mxu0 0.0
        %341 = vmatprep.subr.mxu0 0.0
        %342 = vmatpush1.msra.mxu0 0.0
        %343 = vmatprep.subr.mxu0 0.0
        %344 = vmatpush1.msra.mxu0 0.0
        %345 = vmatprep.subr.mxu0 0.0
        %346 = vmatpush1.msra.mxu0 0.0
        %347 = vmatprep.subr.mxu0 0.0
        %348 = vmatpush1.msra.mxu0 0.0
        %349 = vmatprep.subr.mxu0 0.0
        %350 = vmatpush1.msra.mxu0 0.0
        %351 = vmatprep.subr.mxu0 0.0
        %352 = vmatpush1.msra.mxu0 0.0
        %353 = vmatprep.subr.mxu0 0.0
        %354 = vmatpush1.msra.mxu0 0.0
        %355 = vmatprep.mubr.f32.mxu0 0.0
        %356 = vmatmul.mubr.f32.gmra.mrb[0].mxu0 %v289
        %v357 = vpop.f32.mrb[0].mxu0
        %v358 = vadd.f32 0.0, %v357
        %v359 = vpop.f32.mrb[0].mxu0
        %360 = vdwg.mxu0
        %v361 = vadd.f32 %v281, %v358
        %362 = vst [vmem:[#allocation2] sm:$0xff] %v361
        // Predicated region
        $region45: #{tpu_custom_call.1} parent=31 // pred_check
          %p363 = pneg %p276
        $region46: #{tpu_custom_call.1} parent=31 // pred_check_branch
          %365 = sbr.rel (%p363) target = $region48
        $region47: #{tpu_custom_call.1} parent=31 // pred_region
          %v366 = vld [vmem:[#allocation2] sm:$0xff]
          %v367 = vld [vmem:[%s274] sm:$0x1]
          %v369 = vlaneseq
          %v370 = vshrl.u32 %v369, 7
          %v371 = vsub.s32 0, %v370
          %v372 = vrot.slane %v367, %v371
          %v374 = vadd.f32 %v366, %v372
          %375 = vst [vmem:[%s267] sm:$0xff] %v374
        $region48: #{tpu_custom_call.1} parent=31 // pred_fallthru
          _
        %s376 = sand.u32 %s145, 1
        %s377 = scalar_lea.sflag [#allocation5], %s376
        %s378 = sand.u32 %s145, 1
        %s379 = smul.addr %s378, 8
        %s380 = scalar_lea.vmem [#allocation8], %s379
        // Predicated region
        $region49: #{tpu_custom_call.1} parent=31 // pred_check
          %p381 = pneg %p155
        $region50: #{tpu_custom_call.1} parent=31 // pred_check_branch
          %383 = sbr.rel (%p381) target = $region52
        $region51: #{tpu_custom_call.1} parent=31 // pred_region
          %s384 = sadd.s32 %s27, %s29
          %s386 = ssub.s32 128, 128
          %387 = vsyncadd %s377, %s386
          %s388 = smul.addr %s28, 2
          %s389 = sadd.s32 %s384, %s388
          %s390 = smul.addr %s389, 128
          %s391 = scalar_lea.hbm %s3, %s390
          %s393 = sshll.u32 %s380, 4
          %s394 = int_to_ptr.vmem [resolvable:$true] %s393
          %396 = dma.vmem_to_hbm [thread:$0]  %s394, 128, %s391, %s377
        $region52: #{tpu_custom_call.1} parent=31 // pred_fallthru
          _
      $region32: #{tpu_custom_call.1} parent=5 // pred_fallthru
        _
      %p397 = scmp.le.s32.totalorder 2, %s16
      // Predicated region
      $region53: #{tpu_custom_call.1} parent=5 // pred_check
        %p398 = pneg %p397
      $region54: #{tpu_custom_call.1} parent=5 // pred_check_branch
        %400 = sbr.rel (%p398) target = $region56
      $region55: #{tpu_custom_call.1} parent=5 // pred_region
        %s401 = ssub.s32 %s16, 2
        // Predicated region
        $region57: #{tpu_custom_call.1} parent=55 // pred_check
          %p402 = pneg %p161
        $region58: #{tpu_custom_call.1} parent=55 // pred_check_branch
          %404 = sbr.rel (%p402) target = $region60
        $region59: #{tpu_custom_call.1} parent=55 // pred_region
          %s405 = sand.u32 %s146, 1
          %s406 = scalar_lea.sflag [#allocation5], %s405
          %s407 = sand.u32 %s146, 1
          %s408 = smul.addr %s407, 8
          %s409 = scalar_lea.vmem [#allocation8], %s408
          %410 = dma.done %s406, 128
        $region60: #{tpu_custom_call.1} parent=55 // pred_fallthru
          _
      $region56: #{tpu_custom_call.1} parent=5 // pred_fallthru
        _
    $region6: #{tpu_custom_call.1} parent=1 // loop_footer
      %s20 = sadd.s32 1, %s16
    $region7: #{tpu_custom_call.1} parent=1 // loop_footer_branch
      %15 = sbr.rel target = $region3
    $region8: #{tpu_custom_call.1} parent=1 // loop_exit
      _
    %411 = vsyncpa [#allocation4], 1
    %s412 = scalar_lea.sflag [#allocation4], 1
    %413 = vsyncpa %s412, 1
    %414 = vsyncpa [#allocation7], 1
    %s415 = scalar_lea.sflag [#allocation7], 1
    %416 = vsyncpa %s415, 1
    %417 = vsyncpa [#allocation5], 1
    %s418 = scalar_lea.sflag [#allocation5], 1
    %419 = vsyncpa %s418, 1

</llo_original>
